<compile_context>
chip_gen: v5e
topology: v5e:2x2
jax: 0.10.0
libtpu: 0.0.40
codegen_flags: <defaults>
</compile_context>

<pallas_src>
import jax
import jax.numpy as jnp
from jax import lax
from jax.experimental import pallas as pl
from jax.experimental.pallas import tpu as pltpu


# --------------------- Fully fused MHA kernel (per batch, per head) ---------------------

def _fused_mha_kernel(x_ref, wqkv_ref, wout_ref, bias_ref, o_ref, acc_ref):
    """One grid step = one (batch, head) pair.

    x_ref:    (1, n, dim)        f32   (resident across the head axis)
    wqkv_ref: (1, 3, dim, d)     bf16  (scale already folded into the q slice)
    wout_ref: (1, d, out_dim)    bf16
    bias_ref: (1, out_dim)       f32
    o_ref:    (1, n, out_dim)          (written only on the last head)
    acc_ref:  (n, out_dim)       f32   VMEM accumulator for the fused out-projection
    """
    ih = pl.program_id(1)

    @pl.when(ih == 0)
    def _init():
        acc_ref[...] = jnp.zeros_like(acc_ref)

    # bf16 MXU operands, f32 accumulation.
    x = x_ref[0].astype(jnp.bfloat16)                            # (n, dim)

    q = jnp.dot(x, wqkv_ref[0, 0], preferred_element_type=jnp.float32)   # (n, d)
    k = jnp.dot(x, wqkv_ref[0, 1], preferred_element_type=jnp.float32)   # (n, d)
    v = jnp.dot(x, wqkv_ref[0, 2], preferred_element_type=jnp.float32)   # (n, d)

    # scores = q @ k^T  (contract last dims, no explicit transpose; scale is in wq).
    scores = lax.dot_general(
        q.astype(jnp.bfloat16), k.astype(jnp.bfloat16),
        (((1,), (1,)), ((), ())),
        preferred_element_type=jnp.float32,
    )                                                            # (n, n) f32

    # Softmax in f32 on the VPU/EUP; EUP approximate reciprocal replaces the divide.
    m = jnp.max(scores, axis=-1, keepdims=True)
    e = jnp.exp(scores - m)
    denom = jnp.sum(e, axis=-1, keepdims=True)
    probs = (e * pl.reciprocal(denom, approx=True)).astype(jnp.bfloat16)

    head_out = jnp.dot(probs, v.astype(jnp.bfloat16),
                       preferred_element_type=jnp.float32)       # (n, d) f32

    # Fused output projection: accumulate this head's contribution in f32.
    acc_ref[...] += jnp.dot(head_out.astype(jnp.bfloat16), wout_ref[0],
                            preferred_element_type=jnp.float32)  # (n, out_dim)

    @pl.when(ih == pl.num_programs(1) - 1)
    def _finalize():
        o_ref[0] = (acc_ref[...] + bias_ref[...]).astype(o_ref.dtype)


def fused_attention_pallas(x, w_qkv_hm, w_out_hm, bias_2d):
    """x: (b, n, dim); w_qkv_hm: (h, 3, dim, d); w_out_hm: (h, d, out_dim);
    bias_2d: (1, out_dim) -> (b, n, out_dim)."""
    b, n, dim = x.shape
    h, three, dim2, d = w_qkv_hm.shape
    assert three == 3 and dim2 == dim
    out_dim = w_out_hm.shape[-1]

    flops = b * h * (3 * 2 * n * dim * d + 4 * n * n * d + 2 * n * d * out_dim)
    bytes_accessed = (4 * b * n * (dim + out_dim)                    # x in, out written (f32)
                      + 2 * b * h * (3 * dim * d + d * out_dim)      # bf16 weights, re-read per batch
                      + 4 * out_dim)

    return pl.pallas_call(
        _fused_mha_kernel,
        out_shape=jax.ShapeDtypeStruct((b, n, out_dim), x.dtype),
        grid=(b, h),
        in_specs=[
            pl.BlockSpec((1, n, dim), lambda ib, ih: (ib, 0, 0)),
            pl.BlockSpec((1, 3, dim, d), lambda ib, ih: (ih, 0, 0, 0)),
            pl.BlockSpec((1, d, out_dim), lambda ib, ih: (ih, 0, 0)),
            pl.BlockSpec((1, out_dim), lambda ib, ih: (0, 0)),
        ],
        out_specs=pl.BlockSpec((1, n, out_dim), lambda ib, ih: (ib, 0, 0)),
        scratch_shapes=[pltpu.VMEM((n, out_dim), jnp.float32)],
        compiler_params=pltpu.CompilerParams(
            dimension_semantics=("parallel", "arbitrary"),
        ),
        cost_estimate=pl.CostEstimate(
            flops=flops,
            transcendentals=b * h * n * n,
            bytes_accessed=bytes_accessed,
        ),
    )(x, w_qkv_hm, w_out_hm, bias_2d)


# ------------------------------ Module wrapper --------------------------------

class AttentionPallas:
    """JAX/Pallas equivalent of the PyTorch `Attention` module (eval mode)."""

    def __init__(self, dim, heads=8, dim_head=64, dropout=0.0, key=None):
        inner_dim = dim_head * heads
        self.heads = heads
        self.dim_head = dim_head
        self.dim = dim
        self.inner_dim = inner_dim
        self.scale = dim_head ** (-0.5)
        self.project_out = not (heads == 1 and dim_head == dim)

        if key is None:
            key = jax.random.PRNGKey(0)
        k1, k2, k3 = jax.random.split(key, 3)
        # nn.Linear default init U(-1/sqrt(in), 1/sqrt(in)); weights stored (in, out).
        bound_qkv = 1.0 / (dim ** 0.5)
        self.w_qkv = jax.random.uniform(
            k1, (dim, inner_dim * 3), jnp.float32, -bound_qkv, bound_qkv
        )
        if self.project_out:
            bound_out = 1.0 / (inner_dim ** 0.5)
            self.w_out = jax.random.uniform(
                k2, (inner_dim, dim), jnp.float32, -bound_out, bound_out
            )
            self.b_out = jax.random.uniform(
                k3, (dim,), jnp.float32, -bound_out, bound_out
            )
        else:
            self.w_out = None
            self.b_out = None

        # ---- one-time kernel-side parameter pre-arrangement (done at init) ----
        # Head-major QKV weight (h, 3, dim, d); softmax scale folded into the q
        # slices; cast to bf16 for the MXU.
        w_hm = self.w_qkv.reshape(dim, 3, heads, dim_head).transpose(2, 1, 0, 3)
        w_hm = w_hm.at[:, 0].multiply(self.scale)
        self.w_qkv_hm = w_hm.astype(jnp.bfloat16)

        if self.project_out:
            self.w_out_hm = self.w_out.reshape(heads, dim_head, dim).astype(jnp.bfloat16)
            self.b_out_2d = self.b_out.reshape(1, dim).astype(jnp.float32)
            self.out_dim = dim
        else:
            # Identity "projection" keeps a single kernel code path (heads == 1 here).
            self.w_out_hm = jnp.eye(inner_dim, dtype=jnp.bfloat16).reshape(
                heads, dim_head, inner_dim)
            self.b_out_2d = jnp.zeros((1, inner_dim), jnp.float32)
            self.out_dim = inner_dim

    def __call__(self, x):
        b, n, dim = x.shape
        assert dim == self.dim
        # Single fused pallas_call: QKV projection + softmax attention + output
        # projection (+ bias). No HBM intermediates, no host-side transposes.
        return fused_attention_pallas(x, self.w_qkv_hm, self.w_out_hm, self.b_out_2d)


# ------------------------------ Reference (JAX, f32) --------------------------------

def attention_reference(x, w_qkv, w_out, b_out, heads, dim_head):
    b, n, dim = x.shape
    scale = dim_head ** (-0.5)
    qkv = x @ w_qkv
    q, k, v = jnp.split(qkv, 3, axis=-1)

    def split_heads(t):
        return jnp.transpose(t.reshape(b, n, heads, dim_head), (0, 2, 1, 3))

    q, k, v = map(split_heads, (q, k, v))
    dots = jnp.einsum("bhid,bhjd->bhij", q, k) * scale
    attn = jax.nn.softmax(dots, axis=-1)
    out = jnp.einsum("bhij,bhjd->bhid", attn, v)
    out = jnp.transpose(out, (0, 2, 1, 3)).reshape(b, n, heads * dim_head)
    if w_out is not None:
        out = out @ w_out + b_out
    return out


# ---------------------------------- Main ---------------------------------------

if __name__ == "__main__":
    # Small shapes consistent with the module's forward: x is (b, n, dim).
    b, n, dim = 2, 8, 32
    heads, dim_head = 8, 16          # inner_dim = h*d = 128

    key = jax.random.PRNGKey(0)
    k_x, k_params = jax.random.split(key)
    x = jax.random.normal(k_x, (b, n, dim), dtype=jnp.float32)

    module = AttentionPallas(dim, heads=heads, dim_head=dim_head, key=k_params)

    out = module(x)
    out = jax.block_until_ready(out)

    ref = attention_reference(
        x, module.w_qkv, module.w_out, module.b_out, heads, dim_head
    )
    assert out.shape == (b, n, dim)
    # Tolerance accounts for bf16 MXU operands and the EUP approximate reciprocal.
    assert jnp.allclose(out, ref, atol=2e-2, rtol=2e-2), "mismatch vs reference"

    print("KERNEL_OK")
</pallas_src>

<mosaic_0001>
module attributes {stable_mosaic.version = 11 : i64} {
  func.func @_fused_mha_kernel(%arg0: i32, %arg1: i32, %arg2: memref<1x8x32xf32, #tpu.memory_space<vmem>>, %arg3: memref<1x3x32x16xbf16, #tpu.memory_space<vmem>>, %arg4: memref<1x16x32xbf16, #tpu.memory_space<vmem>>, %arg5: memref<1x32xf32, #tpu.memory_space<vmem>>, %arg6: memref<1x8x32xf32, #tpu.memory_space<vmem>>, %arg7: memref<8x32xf32, #tpu.memory_space<vmem>>) attributes {dimension_semantics = [#tpu.dimension_semantics<parallel>, #tpu.dimension_semantics<arbitrary>], iteration_bounds = array<i64: 2, 8>, scalar_prefetch = 0 : i64, scratch_operands = 1 : i64, tpu.core_type = #tpu.core_type<tc>, window_params = [{transform_indices = @transform_0, window_bounds = array<i64: 1, 8, 32>}, {transform_indices = @transform_1, window_bounds = array<i64: 1, 3, 32, 16>}, {transform_indices = @transform_2, window_bounds = array<i64: 1, 16, 32>}, {pipeline_mode = #tpu.pipeline_mode<synchronous>, transform_indices = @transform_3, window_bounds = array<i64: 1, 32>}, {transform_indices = @transform_4, window_bounds = array<i64: 1, 8, 32>}]} {
    %c0_i32 = arith.constant 0 : i32
    %0 = arith.cmpi eq, %arg1, %c0_i32 : i32
    %1 = arith.extui %0 : i1 to i32
    %c0_i32_0 = arith.constant 0 : i32
    %2 = arith.cmpi ne, %1, %c0_i32_0 : i32
    scf.if %2 {
      %cst_28 = arith.constant 0.000000e+00 : f32
      %41 = vector.broadcast %cst_28 : f32 to vector<8x32xf32>
      %c0_29 = arith.constant 0 : index
      %c0_30 = arith.constant 0 : index
      %42 = vector.load %arg7[%c0_29, %c0_30] : memref<8x32xf32, #tpu.memory_space<vmem>>, vector<8x32xf32>
      tpu.vector_store %arg7[%c0_29, %c0_30], %41 {strides = array<i32>} : memref<8x32xf32, #tpu.memory_space<vmem>>, vector<8x32xf32>,
    } else {
    }
    %c0 = arith.constant 0 : index
    %c0_1 = arith.constant 0 : index
    %c0_2 = arith.constant 0 : index
    %3 = vector.load %arg2[%c0, %c0_1, %c0_2] : memref<1x8x32xf32, #tpu.memory_space<vmem>>, vector<1x8x32xf32>
    %4 = vector.shape_cast %3 : vector<1x8x32xf32> to vector<8x32xf32>
    %5 = arith.truncf %4 : vector<8x32xf32> to vector<8x32xbf16>
    %c0_3 = arith.constant 0 : index
    %c0_4 = arith.constant 0 : index
    %c0_5 = arith.constant 0 : index
    %c0_6 = arith.constant 0 : index
    %6 = vector.load %arg3[%c0_3, %c0_4, %c0_5, %c0_6] : memref<1x3x32x16xbf16, #tpu.memory_space<vmem>>, vector<1x1x32x16xbf16>
    %7 = vector.shape_cast %6 : vector<1x1x32x16xbf16> to vector<32x16xbf16>
    %cst = arith.constant dense<0.000000e+00> : vector<8x16xf32>
    %8 = tpu.matmul %5, %7, %cst {dimension_numbers = #tpu.dot_dimension_numbers<[1], [0], [0], [1], [0, 0, 1, 1], [], []>} : vector<8x32xbf16>, vector<32x16xbf16>, vector<8x16xf32> -> vector<8x16xf32>
    %c0_7 = arith.constant 0 : index
    %c1 = arith.constant 1 : index
    %c0_8 = arith.constant 0 : index
    %c0_9 = arith.constant 0 : index
    %9 = vector.load %arg3[%c0_7, %c1, %c0_8, %c0_9] : memref<1x3x32x16xbf16, #tpu.memory_space<vmem>>, vector<1x1x32x16xbf16>
    %10 = vector.shape_cast %9 : vector<1x1x32x16xbf16> to vector<32x16xbf16>
    %cst_10 = arith.constant dense<0.000000e+00> : vector<8x16xf32>
    %11 = tpu.matmul %5, %10, %cst_10 {dimension_numbers = #tpu.dot_dimension_numbers<[1], [0], [0], [1], [0, 0, 1, 1], [], []>} : vector<8x32xbf16>, vector<32x16xbf16>, vector<8x16xf32> -> vector<8x16xf32>
    %c0_11 = arith.constant 0 : index
    %c2 = arith.constant 2 : index
    %c0_12 = arith.constant 0 : index
    %c0_13 = arith.constant 0 : index
    %12 = vector.load %arg3[%c0_11, %c2, %c0_12, %c0_13] : memref<1x3x32x16xbf16, #tpu.memory_space<vmem>>, vector<1x1x32x16xbf16>
    %13 = vector.shape_cast %12 : vector<1x1x32x16xbf16> to vector<32x16xbf16>
    %cst_14 = arith.constant dense<0.000000e+00> : vector<8x16xf32>
    %14 = tpu.matmul %5, %13, %cst_14 {dimension_numbers = #tpu.dot_dimension_numbers<[1], [0], [0], [1], [0, 0, 1, 1], [], []>} : vector<8x32xbf16>, vector<32x16xbf16>, vector<8x16xf32> -> vector<8x16xf32>
    %15 = arith.truncf %8 : vector<8x16xf32> to vector<8x16xbf16>
    %16 = arith.truncf %11 : vector<8x16xf32> to vector<8x16xbf16>
    %cst_15 = arith.constant dense<0.000000e+00> : vector<8x8xf32>
    %17 = tpu.matmul %15, %16, %cst_15 {dimension_numbers = #tpu.dot_dimension_numbers<[1], [1], [0], [0], [0, 0, 1, 0], [], []>} : vector<8x16xbf16>, vector<8x16xbf16>, vector<8x8xf32> -> vector<8x8xf32>
    %cst_16 = arith.constant dense<0xFF800000> : vector<8xf32>
    %18 = vector.multi_reduction <maximumf>, %17, %cst_16 [1] : vector<8x8xf32> to vector<8xf32>
    %19 = vector.shape_cast %18 : vector<8xf32> to vector<8x1xf32>
    %20 = vector.broadcast %19 : vector<8x1xf32> to vector<8x8xf32>
    %21 = arith.subf %17, %20 : vector<8x8xf32>
    %22 = math.exp %21 : vector<8x8xf32>
    %cst_17 = arith.constant dense<0.000000e+00> : vector<8xf32>
    %23 = vector.multi_reduction <add>, %22, %cst_17 [1] : vector<8x8xf32> to vector<8xf32>
    %24 = vector.shape_cast %23 : vector<8xf32> to vector<8x1xf32>
    %25 = tpu.reciprocal %24 {approx = true} : vector<8x1xf32> -> vector<8x1xf32>
    %26 = vector.broadcast %25 : vector<8x1xf32> to vector<8x8xf32>
    %27 = arith.mulf %22, %26 : vector<8x8xf32>
    %28 = arith.truncf %27 : vector<8x8xf32> to vector<8x8xbf16>
    %29 = arith.truncf %14 : vector<8x16xf32> to vector<8x16xbf16>
    %cst_18 = arith.constant dense<0.000000e+00> : vector<8x16xf32>
    %30 = tpu.matmul %28, %29, %cst_18 {dimension_numbers = #tpu.dot_dimension_numbers<[1], [0], [0], [1], [0, 0, 1, 1], [], []>} : vector<8x8xbf16>, vector<8x16xbf16>, vector<8x16xf32> -> vector<8x16xf32>
    %c0_19 = arith.constant 0 : index
    %c0_20 = arith.constant 0 : index
    %31 = vector.load %arg7[%c0_19, %c0_20] : memref<8x32xf32, #tpu.memory_space<vmem>>, vector<8x32xf32>
    %32 = arith.truncf %30 : vector<8x16xf32> to vector<8x16xbf16>
    %c0_21 = arith.constant 0 : index
    %c0_22 = arith.constant 0 : index
    %c0_23 = arith.constant 0 : index
    %33 = vector.load %arg4[%c0_21, %c0_22, %c0_23] : memref<1x16x32xbf16, #tpu.memory_space<vmem>>, vector<1x16x32xbf16>
    %34 = vector.shape_cast %33 : vector<1x16x32xbf16> to vector<16x32xbf16>
    %cst_24 = arith.constant dense<0.000000e+00> : vector<8x32xf32>
    %35 = tpu.matmul %32, %34, %cst_24 {dimension_numbers = #tpu.dot_dimension_numbers<[1], [0], [0], [1], [0, 0, 1, 1], [], []>} : vector<8x16xbf16>, vector<16x32xbf16>, vector<8x32xf32> -> vector<8x32xf32>
    %36 = arith.addf %31, %35 : vector<8x32xf32>
    %c0_25 = arith.constant 0 : index
    %c0_26 = arith.constant 0 : index
    %37 = vector.load %arg7[%c0_25, %c0_26] : memref<8x32xf32, #tpu.memory_space<vmem>>, vector<8x32xf32>
    tpu.vector_store %arg7[%c0_25, %c0_26], %36 {strides = array<i32>} : memref<8x32xf32, #tpu.memory_space<vmem>>, vector<8x32xf32>,
    %c7_i32 = arith.constant 7 : i32
    %38 = arith.cmpi eq, %arg1, %c7_i32 : i32
    %39 = arith.extui %38 : i1 to i32
    %c0_i32_27 = arith.constant 0 : i32
    %40 = arith.cmpi ne, %39, %c0_i32_27 : i32
    scf.if %40 {
      %c0_28 = arith.constant 0 : index
      %c0_29 = arith.constant 0 : index
      %41 = vector.load %arg7[%c0_28, %c0_29] : memref<8x32xf32, #tpu.memory_space<vmem>>, vector<8x32xf32>
      %c0_30 = arith.constant 0 : index
      %c0_31 = arith.constant 0 : index
      %42 = vector.load %arg5[%c0_30, %c0_31] : memref<1x32xf32, #tpu.memory_space<vmem>>, vector<1x32xf32>
      %43 = vector.broadcast %42 : vector<1x32xf32> to vector<8x32xf32>
      %44 = arith.addf %41, %43 : vector<8x32xf32>
      %c0_32 = arith.constant 0 : index
      %c0_33 = arith.constant 0 : index
      %c0_34 = arith.constant 0 : index
      %45 = vector.load %arg6[%c0_32, %c0_33, %c0_34] : memref<1x8x32xf32, #tpu.memory_space<vmem>>, vector<1x8x32xf32>
      %46 = vector.shape_cast %45 : vector<1x8x32xf32> to vector<8x32xf32>
      %47 = vector.shape_cast %44 : vector<8x32xf32> to vector<1x8x32xf32>
      tpu.vector_store %arg6[%c0_32, %c0_33, %c0_34], %47 {strides = array<i32>} : memref<1x8x32xf32, #tpu.memory_space<vmem>>, vector<1x8x32xf32>,
    } else {
    }
    return
  }
  func.func @transform_0(%arg0: i32, %arg1: i32) -> (i32, i32, i32) {
    %c0_i32 = arith.constant 0 : i32
    %c0_i32_0 = arith.constant 0 : i32
    %c0_i32_1 = arith.constant 0 : i32
    return %arg0, %c0_i32, %c0_i32_0 : i32, i32, i32
  }
  func.func @transform_1(%arg0: i32, %arg1: i32) -> (i32, i32, i32, i32) {
    %c0_i32 = arith.constant 0 : i32
    %c0_i32_0 = arith.constant 0 : i32
    %c0_i32_1 = arith.constant 0 : i32
    %c0_i32_2 = arith.constant 0 : i32
    return %arg1, %c0_i32, %c0_i32_0, %c0_i32_1 : i32, i32, i32, i32
  }
  func.func @transform_2(%arg0: i32, %arg1: i32) -> (i32, i32, i32) {
    %c0_i32 = arith.constant 0 : i32
    %c0_i32_0 = arith.constant 0 : i32
    %c0_i32_1 = arith.constant 0 : i32
    return %arg1, %c0_i32, %c0_i32_0 : i32, i32, i32
  }
  func.func @transform_3(%arg0: i32, %arg1: i32) -> (i32, i32) {
    %c0_i32 = arith.constant 0 : i32
    %c0_i32_0 = arith.constant 0 : i32
    %c0_i32_1 = arith.constant 0 : i32
    return %c0_i32, %c0_i32_0 : i32, i32
  }
  func.func @transform_4(%arg0: i32, %arg1: i32) -> (i32, i32, i32) {
    %c0_i32 = arith.constant 0 : i32
    %c0_i32_0 = arith.constant 0 : i32
    %c0_i32_1 = arith.constant 0 : i32
    return %arg0, %c0_i32, %c0_i32_0 : i32, i32, i32
  }
}

</mosaic_0001>

<llo_original>
// kernel: tpu_custom_call.1
$region0: #{tpu_custom_call.1}
  #allocation0 [shape = 'u32[]', space=smem, size = 0x4, offset = 0x4, fixed_abs, tag = 'smem constant byte address 0x4 - core index']
  #allocation1 [shape = 'u32[72,128]{1,0:T(1,128)}', space=vmem, size = 0x9000, scoped, tag = 'internal scratch']
  #allocation2 [shape = 'f32[8,32]{1,0:T(8,128)}', space=vmem, size = 0x1000, scoped, tag = 'scratch operand']
  %s0 = inlined_call_operand.vmem [shape: f32[2,8,32], index: 0, kind: input, shape index: {}]
  %s1 = inlined_call_operand.vmem [shape: bf16[8,3,32,16], index: 1, kind: input, shape index: {}]
  %s2 = inlined_call_operand.vmem [shape: bf16[8,16,32], index: 2, kind: input, shape index: {}]
  %s3 = inlined_call_operand.vmem [shape: f32[1,32], index: 3, kind: input, shape index: {}]
  %s4 = inlined_call_operand.hbm [shape: f32[2,8,32], index: 4, kind: output, shape index: {}]
  %s5 = sld [smem:[#allocation0]]
  $region57: #{tpu_custom_call.1} parent=0
    _
  %s7 = ssub.s32 1, %s5
  %s8 = scalar_select 0, %s7, %s5
  $region1: #{tpu_custom_call.1} parent=0
    #allocation3 [shape = 'u8[8192]{0}', space=vmem, size = 0x2000, scoped, tag = 'output window, operand 0']
    #allocation4 [shape = 's32[2]{0}', space=sflag, size = 0x8, scoped, tag = 'scoped memory for tpu_custom_call.1']
    %9 = vsyncpa [#allocation4], 0
    %s10 = scalar_lea.sflag [#allocation4], 1
    %11 = vsyncpa %s10, 0
    loop: start=0, step=1, limit=18
    $region2: #{tpu_custom_call.1} parent=1 // loop_pre_header
      _
    $region3: #{tpu_custom_call.1} parent=1 // loop_header
      %s13 = sphi 0, %s17
      %p14 = scmp.ge.s32.totalorder %s13, 18
      %s20 = sphi 0, %s32
      %s21 = sphi 0, %s28
      %s22 = sphi 0, %s20
      %s23 = sphi 0, %s21
      %s24 = sphi 0, %s22
      %s25 = sphi 0, %s23
      %s35 = sphi 0, %s37
      %s38 = sphi 0, %s35
      %s39 = sphi 0, %s38
      %s55 = sphi 0, %s39
      %s61 = sphi 0, %s63
      %s64 = sphi 0, %s61
      %s65 = sphi 0, %s64
      %s81 = sphi 0, %s65
      %s87 = sphi 0, %s89
      %s90 = sphi 0, %s87
      %s91 = sphi 0, %s90
      %s107 = sphi 0, %s91
      %s111 = sphi 0, %s111
      %s113 = sphi 0, %s111
      %s114 = sphi 0, %s113
      %s128 = sphi 0, %s114
      %s134 = sphi 0, %s136
      %s137 = sphi 0, %s134
      %s138 = sphi 0, %s137
      %s154 = sphi 0, %s138
    $region4: #{tpu_custom_call.1} parent=1 // loop_header_branch
      %16 = sbr.rel (%p14) target = $region8
    $region5: #{tpu_custom_call.1} parent=1 // loop_body
      %s18 = ssub.s32 %s13, 1
      %s19 = ssub.s32 %s13, 2
      %s26 = sadd.s32 1, %s21
      %p27 = scmp.ge.s32.totalorder %s26, 8
      %s28 = scalar_select %p27, 0, %s26
      %s29 = sadd.s32 1, %s20
      %s30 = scalar_select %p27, %s29, %s20
      %p31 = scmp.ge.s32.totalorder %s30, 2
      %s32 = scalar_select %p31, 0, %s30
      %s33 = ssub.s32 %s20, %s32
      %p34 = scmp.eq.s32.totalorder %s33, 0
      %s36 = sadd.s32 %s35, 1
      %s37 = scalar_select %p34, %s35, %s36
      %p40 = pneg %p34
      %p41 = scmp.eq.s32.totalorder %s13, 15
      %p42 = por %p40, %p41
      %p43 = scmp.ne.s32.totalorder %s35, %s38
      %p44 = scmp.eq.s32.totalorder %s13, 0
      %p45 = por %p43, %p44
      %p46 = scmp.ne.s32.totalorder %s35, %s38
      %p47 = scmp.eq.s32.totalorder %s18, 15
      %p48 = por %p46, %p47
      %p49 = scmp.ne.s32.totalorder %s38, %s39
      %p50 = scmp.eq.s32.totalorder %s18, 0
      %p51 = por %p49, %p50
      %p52 = scmp.ne.s32.totalorder %s38, %s39
      %p53 = scmp.eq.s32.totalorder %s19, 15
      %p54 = por %p52, %p53
      %p56 = scmp.ne.s32.totalorder %s39, %s55
      %p57 = scmp.eq.s32.totalorder %s19, 0
      %p58 = por %p56, %p57
      %s59 = ssub.s32 %s21, %s28
      %p60 = scmp.eq.s32.totalorder %s59, 0
      %s62 = sadd.s32 %s61, 1
      %s63 = scalar_select %p60, %s61, %s62
      %p66 = pneg %p60
      %p67 = scmp.eq.s32.totalorder %s13, 15
      %p68 = por %p66, %p67
      %p69 = scmp.ne.s32.totalorder %s61, %s64
      %p70 = scmp.eq.s32.totalorder %s13, 0
      %p71 = por %p69, %p70
      %p72 = scmp.ne.s32.totalorder %s61, %s64
      %p73 = scmp.eq.s32.totalorder %s18, 15
      %p74 = por %p72, %p73
      %p75 = scmp.ne.s32.totalorder %s64, %s65
      %p76 = scmp.eq.s32.totalorder %s18, 0
      %p77 = por %p75, %p76
      %p78 = scmp.ne.s32.totalorder %s64, %s65
      %p79 = scmp.eq.s32.totalorder %s19, 15
      %p80 = por %p78, %p79
      %p82 = scmp.ne.s32.totalorder %s65, %s81
      %p83 = scmp.eq.s32.totalorder %s19, 0
      %p84 = por %p82, %p83
      %s85 = ssub.s32 %s21, %s28
      %p86 = scmp.eq.s32.totalorder %s85, 0
      %s88 = sadd.s32 %s87, 1
      %s89 = scalar_select %p86, %s87, %s88
      %p92 = pneg %p86
      %p93 = scmp.eq.s32.totalorder %s13, 15
      %p94 = por %p92, %p93
      %p95 = scmp.ne.s32.totalorder %s87, %s90
      %p96 = scmp.eq.s32.totalorder %s13, 0
      %p97 = por %p95, %p96
      %p98 = scmp.ne.s32.totalorder %s87, %s90
      %p99 = scmp.eq.s32.totalorder %s18, 15
      %p100 = por %p98, %p99
      %p101 = scmp.ne.s32.totalorder %s90, %s91
      %p102 = scmp.eq.s32.totalorder %s18, 0
      %p103 = por %p101, %p102
      %p104 = scmp.ne.s32.totalorder %s90, %s91
      %p105 = scmp.eq.s32.totalorder %s19, 15
      %p106 = por %p104, %p105
      %p108 = scmp.ne.s32.totalorder %s91, %s107
      %p109 = scmp.eq.s32.totalorder %s19, 0
      %p110 = por %p108, %p109
      %s112 = sadd.s32 %s111, 1
      %p115 = scmp.eq.s32.totalorder %s13, 15
      %p116 = scmp.ne.s32.totalorder %s111, %s113
      %p117 = scmp.eq.s32.totalorder %s13, 0
      %p118 = por %p116, %p117
      %p119 = scmp.ne.s32.totalorder %s111, %s113
      %p120 = scmp.eq.s32.totalorder %s18, 15
      %p121 = por %p119, %p120
      %p122 = scmp.ne.s32.totalorder %s113, %s114
      %p123 = scmp.eq.s32.totalorder %s18, 0
      %p124 = por %p122, %p123
      %p125 = scmp.ne.s32.totalorder %s113, %s114
      %p126 = scmp.eq.s32.totalorder %s19, 15
      %p127 = por %p125, %p126
      %p129 = scmp.ne.s32.totalorder %s114, %s128
      %p130 = scmp.eq.s32.totalorder %s19, 0
      %p131 = por %p129, %p130
      %s132 = ssub.s32 %s20, %s32
      %p133 = scmp.eq.s32.totalorder %s132, 0
      %s135 = sadd.s32 %s134, 1
      %s136 = scalar_select %p133, %s134, %s135
      %p139 = pneg %p133
      %p140 = scmp.eq.s32.totalorder %s13, 15
      %p141 = por %p139, %p140
      %p142 = scmp.ne.s32.totalorder %s134, %s137
      %p143 = scmp.eq.s32.totalorder %s13, 0
      %p144 = por %p142, %p143
      %p145 = scmp.ne.s32.totalorder %s134, %s137
      %p146 = scmp.eq.s32.totalorder %s18, 15
      %p147 = por %p145, %p146
      %p148 = scmp.ne.s32.totalorder %s137, %s138
      %p149 = scmp.eq.s32.totalorder %s18, 0
      %p150 = por %p148, %p149
      %p151 = scmp.ne.s32.totalorder %s137, %s138
      %p152 = scmp.eq.s32.totalorder %s19, 15
      %p153 = por %p151, %p152
      %p155 = scmp.ne.s32.totalorder %s138, %s154
      %p156 = scmp.eq.s32.totalorder %s19, 0
      %p157 = por %p155, %p156
      %p158 = scmp.le.s32.totalorder 1, %s13
      %p159 = scmp.lt.s32.totalorder %s13, 17
      %p160 = pnand %p158, %p159
      %p161 = pneg %p160
      // Predicated region
      $region9: #{tpu_custom_call.1} parent=5 // pred_check
        _
      $region10: #{tpu_custom_call.1} parent=5 // pred_check_branch
        %163 = sbr.rel (%p160) target = $region12
      $region11: #{tpu_custom_call.1} parent=5 // pred_region
        %s164 = ssub.s32 %s13, 1
        // Predicated region
        $region13: #{tpu_custom_call.1} parent=11 // pred_check
          %p165 = pneg %p124
        $region14: #{tpu_custom_call.1} parent=11 // pred_check_branch
          %167 = sbr.rel (%p165) target = $region16
        $region15: #{tpu_custom_call.1} parent=11 // pred_region
          _
        $region16: #{tpu_custom_call.1} parent=11 // pred_fallthru
          _
      $region12: #{tpu_custom_call.1} parent=5 // pred_fallthru
        _
      %p168 = scmp.lt.s32.totalorder %s13, 16
      // Predicated region
      $region17: #{tpu_custom_call.1} parent=5 // pred_check
        %p169 = pneg %p168
      $region18: #{tpu_custom_call.1} parent=5 // pred_check_branch
        %171 = sbr.rel (%p169) target = $region20
      $region19: #{tpu_custom_call.1} parent=5 // pred_region
        // Predicated region
        $region21: #{tpu_custom_call.1} parent=19 // pred_check
          %p172 = pneg %p45
        $region22: #{tpu_custom_call.1} parent=19 // pred_check_branch
          %174 = sbr.rel (%p172) target = $region24
        $region23: #{tpu_custom_call.1} parent=19 // pred_region
          %p175 = scmp.lt.s32.totalorder %s20, 1
          %s176 = scalar_select %p175, %s20, 1
          %s177 = smul.addr %s176, 8
          %s178 = scalar_lea.vmem %s0, %s177
        $region24: #{tpu_custom_call.1} parent=19 // pred_fallthru
          _
        // Predicated region
        $region25: #{tpu_custom_call.1} parent=19 // pred_check
          %p179 = pneg %p71
        $region26: #{tpu_custom_call.1} parent=19 // pred_check_branch
          %181 = sbr.rel (%p179) target = $region28
        $region27: #{tpu_custom_call.1} parent=19 // pred_region
          %p182 = scmp.lt.s32.totalorder %s21, 7
          %s183 = scalar_select %p182, %s21, 7
          %s184 = smul.addr %s183, 12
          %s185 = smul.addr %s184, 4
          %s186 = scalar_lea.vmem %s1, %s185
        $region28: #{tpu_custom_call.1} parent=19 // pred_fallthru
          _
        // Predicated region
        $region29: #{tpu_custom_call.1} parent=19 // pred_check
          %p187 = pneg %p97
        $region30: #{tpu_custom_call.1} parent=19 // pred_check_branch
          %189 = sbr.rel (%p187) target = $region32
        $region31: #{tpu_custom_call.1} parent=19 // pred_region
          %p190 = scmp.lt.s32.totalorder %s21, 7
          %s191 = scalar_select %p190, %s21, 7
          %s192 = smul.addr %s191, 2
          %s193 = smul.addr %s192, 4
          %s194 = scalar_lea.vmem %s2, %s193
        $region32: #{tpu_custom_call.1} parent=19 // pred_fallthru
          _
      $region20: #{tpu_custom_call.1} parent=5 // pred_fallthru
        _
      %p195 = scmp.le.s32.totalorder 1, %s13
      %p196 = scmp.lt.s32.totalorder %s13, 17
      %p197 = pnand %p195, %p196
      %p198 = pneg %p197
      // Predicated region
      $region33: #{tpu_custom_call.1} parent=5 // pred_check
        _
      $region34: #{tpu_custom_call.1} parent=5 // pred_check_branch
        %200 = sbr.rel (%p197) target = $region36
      $region35: #{tpu_custom_call.1} parent=5 // pred_region
        %s201 = ssub.s32 %s13, 1
        %p202 = scmp.lt.s32.totalorder %s22, 1
        %s203 = scalar_select %p202, %s22, 1
        %s204 = smul.addr %s203, 8
        %s205 = scalar_lea.vmem %s0, %s204
        %p206 = pneg %p51
        %p207 = pneg %p48
        %p208 = scmp.lt.s32.totalorder %s23, 7
        %s209 = scalar_select %p208, %s23, 7
        %s210 = smul.addr %s209, 12
        %s211 = smul.addr %s210, 4
        %s212 = scalar_lea.vmem %s1, %s211
        %p213 = pneg %p77
        %p214 = pneg %p74
        %p215 = scmp.lt.s32.totalorder %s23, 7
        %s216 = scalar_select %p215, %s23, 7
        %s217 = smul.addr %s216, 2
        %s218 = smul.addr %s217, 4
        %s219 = scalar_lea.vmem %s2, %s218
        %p220 = pneg %p103
        %p221 = pneg %p100
        %p222 = pneg %p124
        %p223 = pneg %p121
        %p224 = pneg %p150
        %p225 = pneg %p147
        %s226 = sand.u32 %s137, 1
        %s227 = scalar_lea.sflag [#allocation4], %s226
        %s228 = sand.u32 %s137, 1
        %s229 = smul.addr %s228, 8
        %s230 = scalar_lea.vmem [#allocation3], %s229
        %p231 = scmp.lt.s32.totalorder %s22, 1
        %s232 = scalar_select %p231, %s22, 1
        %s233 = smul.addr %s232, 8
        %s234 = scalar_lea.vmem %s0, %s233
        %p235 = scmp.lt.s32.totalorder %s23, 7
        %s236 = scalar_select %p235, %s23, 7
        %s237 = smul.addr %s236, 12
        %s238 = smul.addr %s237, 4
        %s239 = scalar_lea.vmem %s1, %s238
        %p240 = scmp.lt.s32.totalorder %s23, 7
        %s241 = scalar_select %p240, %s23, 7
        %s242 = smul.addr %s241, 2
        %s243 = smul.addr %s242, 4
        %s244 = scalar_lea.vmem %s2, %s243
        %p246 = scmp.eq.s32.totalorder %s23, 0
        // Predicated region
        $region37: #{tpu_custom_call.1} parent=35 // pred_check
          %p247 = pneg %p246
        $region38: #{tpu_custom_call.1} parent=35 // pred_check_branch
          %249 = sbr.rel (%p247) target = $region40
        $region39: #{tpu_custom_call.1} parent=35 // pred_region
          %vm250 = vcmask 261120
          %251 = vst.msk [vmem:[#allocation2] sm:$0xff] %vm250, 0.0
        $region40: #{tpu_custom_call.1} parent=35 // pred_fallthru
          _
        %v252 = vld [vmem:[%s234] sm:$0xff]
        %v253 = vpack.c.bf16 %v252, %v252
        %v254 = vld [vmem:[%s239] sm:$0xf]
        %v255 = vld [vmem:[%s239 + $0x4] sm:$0xf]
        %v256 = vld [vmem:[%s239 + $0x8] sm:$0xf]
        %v257 = vld [vmem:[%s239 + $0xc] sm:$0xf]
        %v262 = vunpack.c.l.b16 %v254
        %v263 = vunpack.c.l.b16 %v255
        %v264 = vunpack.c.l.b16 %v256
        %v265 = vunpack.c.l.b16 %v257
        %v266 = vpack.c.b16 %v263, %v262
        %v267 = vpack.c.b16 %v265, %v264
        %vm270 = vcmask 261120
        %v272 = vsel %vm270, %v253, 0
        %274 = vmatpush.bf16.msra.mxu0 0
        %275 = vmatpush.bf16.msra.mxu0 0
        %276 = vmatpush.bf16.msra.mxu0 0
        %277 = vmatpush.bf16.msra.mxu0 0
        %278 = vmatpush.bf16.msra.mxu0 0
        %279 = vmatpush.bf16.msra.mxu0 0
        %280 = vmatpush.bf16.msra.mxu0 %v267
        %281 = vmatpush.bf16.msra.mxu0 %v266
        %282 = vmatmul.bf16.gmra.mxu0 %v272
        %v283 = vpop.f32.mrf.mxu0
        %v284 = vadd.f32 0.0, %v283
        %v285 = vpop.f32.mrf.mxu0
        %286 = vdwg.mxu0
        %s287 = scalar_lea.vmem %s239, 16
        %v288 = vld [vmem:[%s287] sm:$0xf]
        %v289 = vld [vmem:[%s287 + $0x4] sm:$0xf]
        %v290 = vld [vmem:[%s287 + $0x8] sm:$0xf]
        %v291 = vld [vmem:[%s287 + $0xc] sm:$0xf]
        %v296 = vunpack.c.l.b16 %v288
        %v297 = vunpack.c.l.b16 %v289
        %v298 = vunpack.c.l.b16 %v290
        %v299 = vunpack.c.l.b16 %v291
        %v300 = vpack.c.b16 %v297, %v296
        %v301 = vpack.c.b16 %v299, %v298
        %304 = vmatpush.bf16.msra.mxu0 0
        %305 = vmatpush.bf16.msra.mxu0 0
        %306 = vmatpush.bf16.msra.mxu0 0
        %307 = vmatpush.bf16.msra.mxu0 0
        %308 = vmatpush.bf16.msra.mxu0 0
        %309 = vmatpush.bf16.msra.mxu0 0
        %310 = vmatpush.bf16.msra.mxu0 %v301
        %311 = vmatpush.bf16.msra.mxu0 %v300
        %312 = vmatmul.bf16.gmra.mxu0 %v272
        %v313 = vpop.f32.mrf.mxu0
        %v314 = vadd.f32 0.0, %v313
        %v315 = vpop.f32.mrf.mxu0
        %316 = vdwg.mxu0
        %s317 = scalar_lea.vmem %s239, 32
        %v318 = vld [vmem:[%s317] sm:$0xf]
        %v319 = vld [vmem:[%s317 + $0x4] sm:$0xf]
        %v320 = vld [vmem:[%s317 + $0x8] sm:$0xf]
        %v321 = vld [vmem:[%s317 + $0xc] sm:$0xf]
        %v326 = vunpack.c.l.b16 %v318
        %v327 = vunpack.c.l.b16 %v319
        %v328 = vunpack.c.l.b16 %v320
        %v329 = vunpack.c.l.b16 %v321
        %v330 = vpack.c.b16 %v327, %v326
        %v331 = vpack.c.b16 %v329, %v328
        %334 = vmatpush.bf16.msra.mxu0 0
        %335 = vmatpush.bf16.msra.mxu0 0
        %336 = vmatpush.bf16.msra.mxu0 0
        %337 = vmatpush.bf16.msra.mxu0 0
        %338 = vmatpush.bf16.msra.mxu0 0
        %339 = vmatpush.bf16.msra.mxu0 0
        %340 = vmatpush.bf16.msra.mxu0 %v331
        %341 = vmatpush.bf16.msra.mxu0 %v330
        %342 = vmatmul.bf16.gmra.mxu0 %v272
        %v343 = vpop.f32.mrf.mxu0
        %v344 = vadd.f32 0.0, %v343
        %v345 = vpop.f32.mrf.mxu0
        %346 = vdwg.mxu0
        %v347 = vpack.c.bf16 %v284, %v284
        %v348 = vpack.c.bf16 %v314, %v314
        %vm349 = vcmask 130048
        %v351 = vsel %vm349, %v347, 0
        %v354 = vsel %vm349, %v348, 0
        %356 = vmatpush.bf16.xpose.msra.mxu0 0
        %357 = vmatpush.bf16.xpose.msra.mxu0 0
        %358 = vmatpush.bf16.xpose.msra.mxu0 0
        %359 = vmatpush.bf16.xpose.msra.mxu0 0
        %360 = vmatpush.bf16.xpose.msra.mxu0 0
        %361 = vmatpush.bf16.xpose.msra.mxu0 0
        %362 = vmatpush.bf16.xpose.msra.mxu0 0
        %363 = vmatpush.bf16.xpose.msra.mxu0 %v354
        %364 = vmatmul.bf16.gmra.mxu0 %v351
        %v365 = vpop.f32.mrf.mxu0
        %v366 = vadd.f32 0.0, %v365
        %v367 = vpop.f32.mrf.mxu0
        %368 = vdwg.mxu0
        %vm369 = vcmask 64512
        %v370 = vsel %vm369, %v366, -inf
        %371 = vmax.xlane.f32.xlu0 %v370
        %v372 = vpop.xlane.xlu0 %371
        %v373 = vsub.f32 %v366, %v372
        %v374 = vmul.f32 %v373, 1.442695
        %v375 = vpow.pop %v374
        %v376 = vsel %vm369, %v375, 0.0
        %377 = vadd.xlane.f32.xlu0 %v376
        %v378 = vpop.xlane.xlu0 %377
        %v379 = vrcp.pop %v378
        %v380 = vmul.f32 %v375, %v379
        %v381 = vpack.c.bf16 %v380, %v380
        %v382 = vpack.c.bf16 %v344, %v344
        %v384 = vsel %vm369, %v381, 0
        %vm386 = vcmask 1043456
        %v388 = vsel %vm386, %v382, 0
        %390 = vmatpush.bf16.msra.mxu0 0
        %391 = vmatpush.bf16.msra.mxu0 0
        %392 = vmatpush.bf16.msra.mxu0 0
        %393 = vmatpush.bf16.msra.mxu0 0
        %394 = vmatpush.bf16.msra.mxu0 0
        %395 = vmatpush.bf16.msra.mxu0 0
        %396 = vmatpush.bf16.msra.mxu0 0
        %397 = vmatpush.bf16.msra.mxu0 %v388
        %398 = vmatmul.bf16.gmra.mxu0 %v384
        %v399 = vpop.f32.mrf.mxu0
        %v400 = vadd.f32 0.0, %v399
        %v401 = vpop.f32.mrf.mxu0
        %402 = vdwg.mxu0
        %v403 = vld [vmem:[#allocation2] sm:$0xff]
        %v404 = vpack.c.bf16 %v400, %v400
        %v405 = vld [vmem:[%s244] sm:$0xf]
        %v406 = vld [vmem:[%s244 + $0x4] sm:$0xf]
        %v409 = vunpack.c.l.b16 %v405
        %v410 = vunpack.c.l.b16 %v406
        %v411 = vpack.c.b16 %v410, %v409
        %v414 = vsel %vm349, %v404, 0
        %416 = vmatpush.bf16.msra.mxu0 0
        %417 = vmatpush.bf16.msra.mxu0 0
        %418 = vmatpush.bf16.msra.mxu0 0
        %419 = vmatpush.bf16.msra.mxu0 0
        %420 = vmatpush.bf16.msra.mxu0 0
        %421 = vmatpush.bf16.msra.mxu0 0
        %422 = vmatpush.bf16.msra.mxu0 0
        %423 = vmatpush.bf16.msra.mxu0 %v411
        %424 = vmatmul.bf16.gmra.mxu0 %v414
        %v425 = vpop.f32.mrf.mxu0
        %v426 = vadd.f32 0.0, %v425
        %v427 = vpop.f32.mrf.mxu0
        %428 = vdwg.mxu0
        %v429 = vadd.f32 %v403, %v426
        %430 = vst.msk [vmem:[#allocation2] sm:$0xff] %vm270, %v429
        %p431 = scmp.eq.s32.totalorder %s23, 7
        // Predicated region
        $region41: #{tpu_custom_call.1} parent=35 // pred_check
          %p432 = pneg %p431
        $region42: #{tpu_custom_call.1} parent=35 // pred_check_branch
          %434 = sbr.rel (%p432) target = $region44
        $region43: #{tpu_custom_call.1} parent=35 // pred_region
          %v435 = vld [vmem:[#allocation2] sm:$0xff]
          %v436 = vld [vmem:[%s3] sm:$0x1]
          %v438 = vperm.slane %v436, 0
          %v440 = vadd.f32 %v435, %v438
          %441 = vst.msk [vmem:[%s230] sm:$0xff] %vm270, %v440
        $region44: #{tpu_custom_call.1} parent=35 // pred_fallthru
          _
        %s442 = sand.u32 %s137, 1
        %s443 = scalar_lea.sflag [#allocation4], %s442
        %s444 = sand.u32 %s137, 1
        %s445 = smul.addr %s444, 8
        %s446 = scalar_lea.vmem [#allocation3], %s445
        // Predicated region
        $region45: #{tpu_custom_call.1} parent=35 // pred_check
          %p447 = pneg %p147
        $region46: #{tpu_custom_call.1} parent=35 // pred_check_branch
          %449 = sbr.rel (%p447) target = $region48
        $region47: #{tpu_custom_call.1} parent=35 // pred_region
          %451 = vsyncadd %s443, 0
          %s452 = smul.addr %s22, 8
          %s453 = scalar_lea.hbm %s4, %s452
          %s455 = sshll.u32 %s446, 4
          %s456 = int_to_ptr.vmem [resolvable:$true] %s455
          %s457 = sshll.u32 %s453, 4
          %s458 = int_to_ptr.hbm [resolvable:$true] %s457
          %460 = dma.vmem_to_hbm [thread:$0]  %s456, 128, %s458, %s443
        $region48: #{tpu_custom_call.1} parent=35 // pred_fallthru
          _
      $region36: #{tpu_custom_call.1} parent=5 // pred_fallthru
        _
      %p461 = scmp.le.s32.totalorder 2, %s13
      // Predicated region
      $region49: #{tpu_custom_call.1} parent=5 // pred_check
        %p462 = pneg %p461
      $region50: #{tpu_custom_call.1} parent=5 // pred_check_branch
        %464 = sbr.rel (%p462) target = $region52
      $region51: #{tpu_custom_call.1} parent=5 // pred_region
        %s465 = ssub.s32 %s13, 2
        // Predicated region
        $region53: #{tpu_custom_call.1} parent=51 // pred_check
          %p466 = pneg %p153
        $region54: #{tpu_custom_call.1} parent=51 // pred_check_branch
          %468 = sbr.rel (%p466) target = $region56
        $region55: #{tpu_custom_call.1} parent=51 // pred_region
          %s469 = sand.u32 %s138, 1
          %s470 = scalar_lea.sflag [#allocation4], %s469
          %s471 = sand.u32 %s138, 1
          %s472 = smul.addr %s471, 8
          %s473 = scalar_lea.vmem [#allocation3], %s472
          %475 = dma.done %s470, 128
        $region56: #{tpu_custom_call.1} parent=51 // pred_fallthru
          _
      $region52: #{tpu_custom_call.1} parent=5 // pred_fallthru
        _
    $region6: #{tpu_custom_call.1} parent=1 // loop_footer
      %s17 = sadd.s32 1, %s13
    $region7: #{tpu_custom_call.1} parent=1 // loop_footer_branch
      %12 = sbr.rel target = $region3
    $region8: #{tpu_custom_call.1} parent=1 // loop_exit
      _
    %476 = vsyncpa [#allocation4], 1
    %s477 = scalar_lea.sflag [#allocation4], 1
    %478 = vsyncpa %s477, 1

</llo_original>
